<compile_context>
chip_gen: v7x
topology: tpu7x:2x2x1
jax: 0.10.0
libtpu: 0.0.40
codegen_flags: <defaults>
</compile_context>

<pallas_src>
import jax
import jax.numpy as jnp
from jax.experimental import pallas as pl
from jax.experimental.pallas import tpu as pltpu

BN_EPS = 1e-5
LANES = 128
VMEM_LIMIT = 32 << 20   # scoped-VMEM request: v7x default, raises v5e's 16 MiB default


def _round_up(x, m):
    return (x + m - 1) // m * m


def conv_stats_kernel(p_ref, w_ref, stats_ref):
    """One M-tile: conv tile via MXU matmul -> per-tile partial BN statistics.

    p_ref:     (TM, K)        patch tile (bf16 or f32)
    w_ref:     (K, Cout_pad)  weights, resident across the grid
    stats_ref: (2, Cout_pad)  f32 [sum; sum_of_squares] partial for THIS tile
    """
    acc = jnp.dot(p_ref[...], w_ref[...], preferred_element_type=jnp.float32)
    # Zero-padded rows (M -> Mp) contribute exactly 0 to both sums, so no masking is
    # needed; the real-row count M is used as the divisor in the wrapper.
    stats_ref[...] = jnp.concatenate(
        [jnp.sum(acc, axis=0, keepdims=True),
         jnp.sum(acc * acc, axis=0, keepdims=True)], axis=0)


def conv_bn_relu_kernel(p_ref, w_ref, s_ref, b_ref, o_ref):
    """One M-tile: recompute conv tile, then y = relu(conv * scale + shift)."""
    acc = jnp.dot(p_ref[...], w_ref[...], preferred_element_type=jnp.float32)
    y = acc * s_ref[...] + b_ref[...]
    o_ref[...] = jnp.maximum(y, 0.0).astype(o_ref.dtype)


def conv3x3_bn_relu(x, weight, gamma, beta, *, stride=1, padding=0, tm=None,
                    use_bf16=True):
    """x: [N, Cin, H, W] (NCHW); weight: [Cout, Cin, kh, kw]; gamma/beta: [Cout]."""
    N, Cin, H, W = x.shape
    Cout, _, kh, kw = weight.shape
    mm_dtype = jnp.bfloat16 if use_bf16 else jnp.float32   # MXU operand dtype

    # --- im2col (plain-JAX glue), channels-last, cast up front, no extra transpose.
    #     Column order is (kh, kw, Cin); the weight reshape below matches it.
    xl = jnp.transpose(x, (0, 2, 3, 1)).astype(mm_dtype)   # [N, H, W, Cin]
    if padding > 0:
        xl = jnp.pad(xl, ((0, 0), (padding, padding), (padding, padding), (0, 0)))
    Hp, Wp = xl.shape[1], xl.shape[2]
    Ho = (Hp - kh) // stride + 1
    Wo = (Wp - kw) // stride + 1
    K = Cin * kh * kw
    M = N * Ho * Wo
    Cout_pad = _round_up(max(Cout, LANES), LANES)           # lane-dense output channels

    cols = []
    for i in range(kh):
        for j in range(kw):
            cols.append(xl[:, i:i + stride * Ho:stride, j:j + stride * Wo:stride, :])
    patches = jnp.concatenate(cols, axis=-1).reshape(M, K)  # (M, K), already mm_dtype

    # Row-tile size over M.  Per step (double-buffered, pass 2):
    # ~2*TM*(K*2 + Cout_pad*4) bytes ~= 10 MiB at TM=8192, K=36, Cout_pad=128 -> fits
    # every generation's scoped VMEM with the 32 MiB limit below, and is big enough to
    # amortize the ~0.35 us fixed per-step overhead (<10% at TM=8192).
    if tm is None:
        tm = min(8192, _round_up(M, 8))
    tm = max(8, _round_up(int(tm), 8))
    Mp = _round_up(M, tm)
    if Mp > M:
        patches = jnp.pad(patches, ((0, Mp - M), (0, 0)))    # zero rows: stats-neutral
    n_tiles = Mp // tm

    # Weight in (kh, kw, Cin) column order to match the patch columns; pad Cout -> 128.
    w2 = weight.transpose(0, 2, 3, 1).reshape(Cout, K).T     # (K, Cout)
    w2 = jnp.pad(w2, ((0, 0), (0, Cout_pad - Cout))).astype(mm_dtype)

    cparams = pltpu.CompilerParams(dimension_semantics=("parallel",),
                                   vmem_limit_bytes=VMEM_LIMIT)

    # ---- pass 1: per-tile partial BN statistics (no conv intermediate in HBM) -------
    stats = pl.pallas_call(
        conv_stats_kernel,
        out_shape=jax.ShapeDtypeStruct((n_tiles, 2, Cout_pad), jnp.float32),
        grid=(n_tiles,),
        in_specs=[
            pl.BlockSpec((tm, K), lambda i: (i, 0)),
            pl.BlockSpec((K, Cout_pad), lambda i: (0, 0)),    # resident weights
        ],
        out_specs=pl.BlockSpec((None, 2, Cout_pad), lambda i: (i, 0, 0)),
        compiler_params=cparams,
    )(patches, w2)

    # ---- glue: fold BN (train-mode batch stats, biased var) into scale/shift --------
    gamma_pad = jnp.pad(gamma.astype(jnp.float32), (0, Cout_pad - Cout))
    beta_pad = jnp.pad(beta.astype(jnp.float32), (0, Cout_pad - Cout))
    sums = jnp.sum(stats, axis=0)                             # (2, Cout_pad), f32
    inv_m = 1.0 / float(M)
    mean = sums[0] * inv_m
    var = jnp.maximum(sums[1] * inv_m - mean * mean, 0.0)     # guard f32 cancellation
    scale = gamma_pad * jax.lax.rsqrt(var + BN_EPS)
    shift = beta_pad - mean * scale
    scale = scale.reshape(1, Cout_pad)
    shift = shift.reshape(1, Cout_pad)

    # ---- pass 2: recompute conv tile, fused BN scale/shift + ReLU, "parallel" -------
    out2 = pl.pallas_call(
        conv_bn_relu_kernel,
        out_shape=jax.ShapeDtypeStruct((Mp, Cout_pad), x.dtype),
        grid=(n_tiles,),
        in_specs=[
            pl.BlockSpec((tm, K), lambda i: (i, 0)),
            pl.BlockSpec((K, Cout_pad), lambda i: (0, 0)),    # resident weights
            pl.BlockSpec((1, Cout_pad), lambda i: (0, 0)),
            pl.BlockSpec((1, Cout_pad), lambda i: (0, 0)),
        ],
        out_specs=pl.BlockSpec((tm, Cout_pad), lambda i: (i, 0)),
        compiler_params=cparams,
    )(patches, w2, scale, shift)

    # [Mp, Cout_pad] -> [N, Ho, Wo, Cout] -> NCHW (layout glue to match the PyTorch
    # module's output convention; the kernels themselves are channels-last/lane-dense).
    out = out2[:M, :Cout].reshape(N, Ho, Wo, Cout)
    return out.transpose(0, 3, 1, 2)


def reference(x, weight, gamma, beta):
    """Pure-JAX f32 reference of Conv3x3.forward (train-mode BN)."""
    y = jax.lax.conv_general_dilated(
        x, weight, window_strides=(1, 1), padding="VALID",
        dimension_numbers=("NCHW", "OIHW", "NCHW"))
    mean = y.mean(axis=(0, 2, 3), keepdims=True)
    var = y.var(axis=(0, 2, 3), keepdims=True)           # biased, like BN
    yn = (y - mean) / jnp.sqrt(var + BN_EPS)
    yn = yn * gamma.reshape(1, -1, 1, 1) + beta.reshape(1, -1, 1, 1)
    return jnp.maximum(yn, 0.0)


if __name__ == "__main__":
    key = jax.random.PRNGKey(0)
    k_x, k_w, k_g, k_b = jax.random.split(key, 4)

    N, Cin, H, W = 2, 4, 16, 16
    Cout, ksz = 8, 3

    x = jax.random.normal(k_x, (N, Cin, H, W), dtype=jnp.float32)
    fan_in = Cin * ksz * ksz
    weight = jax.random.normal(k_w, (Cout, Cin, ksz, ksz), dtype=jnp.float32) / jnp.sqrt(fan_in)
    gamma = 0.5 + jax.random.uniform(k_g, (Cout,), dtype=jnp.float32)
    beta = 0.1 * jax.random.normal(k_b, (Cout,), dtype=jnp.float32)

    ref = reference(x, weight, gamma, beta)

    # f32 MXU path: strict numerical check. tm=128 -> 4-tile grid, exercising the
    # per-tile partial-stats reduction and the zero-padded rows.
    out_f32 = conv3x3_bn_relu(x, weight, gamma, beta, stride=1, padding=0,
                              tm=128, use_bf16=False)
    out_f32 = jax.block_until_ready(out_f32)
    assert out_f32.shape == (N, Cout, H - 2, W - 2), out_f32.shape
    assert jnp.allclose(out_f32, ref, atol=2e-4, rtol=2e-4), \
        float(jnp.max(jnp.abs(out_f32 - ref)))

    # bf16 MXU path (default performance path): looser tolerance for bf16 operands.
    out_bf16 = conv3x3_bn_relu(x, weight, gamma, beta, stride=1, padding=0,
                               tm=128, use_bf16=True)
    out_bf16 = jax.block_until_ready(out_bf16)
    assert out_bf16.shape == (N, Cout, H - 2, W - 2), out_bf16.shape
    assert jnp.allclose(out_bf16, ref, atol=5e-2, rtol=5e-2), \
        float(jnp.max(jnp.abs(out_bf16 - ref)))

    # Default tm (single fat tile at this size): exercises the big-tile path.
    out_def = conv3x3_bn_relu(x, weight, gamma, beta, stride=1, padding=0)
    out_def = jax.block_until_ready(out_def)
    assert jnp.allclose(out_def, ref, atol=5e-2, rtol=5e-2), \
        float(jnp.max(jnp.abs(out_def - ref)))

    print("KERNEL_OK")
</pallas_src>

<mosaic_0001>
module attributes {stable_mosaic.version = 11 : i64} {
  func.func @conv_stats_kernel(%arg0: i32, %arg1: memref<128x36xf32, #tpu.memory_space<vmem>>, %arg2: memref<36x128xf32, #tpu.memory_space<vmem>>, %arg3: memref<1x2x128xf32, #tpu.memory_space<vmem>>) attributes {dimension_semantics = [#tpu.dimension_semantics<parallel>], iteration_bounds = array<i64: 4>, scalar_prefetch = 0 : i64, scratch_operands = 0 : i64, tpu.core_type = #tpu.core_type<tc>, window_params = [{transform_indices = @transform_0, window_bounds = array<i64: 128, 36>}, {pipeline_mode = #tpu.pipeline_mode<synchronous>, transform_indices = @transform_1, window_bounds = array<i64: 36, 128>}, {transform_indices = @transform_2, window_bounds = array<i64: 1, 2, 128>}]} {
    %c0 = arith.constant 0 : index
    %c0_0 = arith.constant 0 : index
    %0 = vector.load %arg1[%c0, %c0_0] : memref<128x36xf32, #tpu.memory_space<vmem>>, vector<128x36xf32>
    %c0_1 = arith.constant 0 : index
    %c0_2 = arith.constant 0 : index
    %1 = vector.load %arg2[%c0_1, %c0_2] : memref<36x128xf32, #tpu.memory_space<vmem>>, vector<36x128xf32>
    %cst = arith.constant dense<0.000000e+00> : vector<128x128xf32>
    %2 = tpu.matmul %0, %1, %cst {dimension_numbers = #tpu.dot_dimension_numbers<[1], [0], [0], [1], [0, 0, 1, 1], [], []>} : vector<128x36xf32>, vector<36x128xf32>, vector<128x128xf32> -> vector<128x128xf32>
    %cst_3 = arith.constant dense<0.000000e+00> : vector<128xf32>
    %3 = vector.multi_reduction <add>, %2, %cst_3 [0] : vector<128x128xf32> to vector<128xf32>
    %4 = vector.shape_cast %3 : vector<128xf32> to vector<1x128xf32>
    %5 = arith.mulf %2, %2 : vector<128x128xf32>
    %cst_4 = arith.constant dense<0.000000e+00> : vector<128xf32>
    %6 = vector.multi_reduction <add>, %5, %cst_4 [0] : vector<128x128xf32> to vector<128xf32>
    %7 = vector.shape_cast %6 : vector<128xf32> to vector<1x128xf32>
    %8 = tpu.concatenate %4, %7 in 0 : vector<1x128xf32>, vector<1x128xf32> -> vector<2x128xf32>
    %c0_5 = arith.constant 0 : index
    %c0_6 = arith.constant 0 : index
    %c0_7 = arith.constant 0 : index
    %9 = vector.load %arg3[%c0_5, %c0_6, %c0_7] : memref<1x2x128xf32, #tpu.memory_space<vmem>>, vector<1x2x128xf32>
    %10 = vector.shape_cast %9 : vector<1x2x128xf32> to vector<2x128xf32>
    %11 = vector.shape_cast %8 : vector<2x128xf32> to vector<1x2x128xf32>
    tpu.vector_store %arg3[%c0_5, %c0_6, %c0_7], %11 {strides = array<i32>} : memref<1x2x128xf32, #tpu.memory_space<vmem>>, vector<1x2x128xf32>,
    return
  }
  func.func @transform_0(%arg0: i32) -> (i32, i32) {
    %c0_i32 = arith.constant 0 : i32
    %c0_i32_0 = arith.constant 0 : i32
    return %arg0, %c0_i32 : i32, i32
  }
  func.func @transform_1(%arg0: i32) -> (i32, i32) {
    %c0_i32 = arith.constant 0 : i32
    %c0_i32_0 = arith.constant 0 : i32
    %c0_i32_1 = arith.constant 0 : i32
    return %c0_i32, %c0_i32_0 : i32, i32
  }
  func.func @transform_2(%arg0: i32) -> (i32, i32, i32) {
    %c0_i32 = arith.constant 0 : i32
    %c0_i32_0 = arith.constant 0 : i32
    %c0_i32_1 = arith.constant 0 : i32
    return %arg0, %c0_i32, %c0_i32_0 : i32, i32, i32
  }
}

</mosaic_0001>

<llo_original>
// kernel: tpu_custom_call.1
$region0: #{tpu_custom_call.1}
  #allocation0 [shape = 'u32[]', space=smem, size = 0x4, offset = 0x4, fixed_abs, tag = 'smem constant byte address 0x4 - core index']
  #allocation1 [shape = 'u32[144,128]{1,0:T(1,128)}', space=vmem, size = 0x12000, scoped, tag = 'internal scratch']
  %s0 = inlined_call_operand.vmem [shape: f32[512,36], index: 0, kind: input, shape index: {}]
  %s1 = inlined_call_operand.vmem [shape: f32[36,128], index: 1, kind: input, shape index: {}]
  %s2 = inlined_call_operand.hbm [shape: f32[4,2,128], index: 2, kind: output, shape index: {}]
  %s3 = sld [smem:[#allocation0]]
  $region41: #{tpu_custom_call.1} parent=0
    _
  %s5 = ssub.s32 1, %s3
  %s6 = scalar_select 0, %s5, %s3
  $region1: #{tpu_custom_call.1} parent=0
    #allocation2 [shape = 'u8[2048]{0}', space=vmem, size = 0x800, scoped, tag = 'output window, operand 0']
    #allocation3 [shape = 's32[2]{0}', space=sflag, size = 0x8, scoped, tag = 'scoped memory for tpu_custom_call.1']
    %7 = vsyncpa [#allocation3], 0
    %s8 = scalar_lea.sflag [#allocation3], 1
    %9 = vsyncpa %s8, 0
    loop: start=0, step=1, limit=6
    $region2: #{tpu_custom_call.1} parent=1 // loop_pre_header
      _
    $region3: #{tpu_custom_call.1} parent=1 // loop_header
      %s11 = sphi 0, %s15
      %p12 = scmp.ge.s32.totalorder %s11, 6
      %s21 = sphi 0, %s23
      %s24 = sphi 0, %s21
      %s25 = sphi 0, %s24
      %s41 = sphi 0, %s25
      %s45 = sphi 0, %s45
      %s47 = sphi 0, %s45
      %s48 = sphi 0, %s47
      %s62 = sphi 0, %s48
      %s68 = sphi 0, %s70
      %s71 = sphi 0, %s68
      %s72 = sphi 0, %s71
      %s88 = sphi 0, %s72
    $region4: #{tpu_custom_call.1} parent=1 // loop_header_branch
      %14 = sbr.rel (%p12) target = $region8
    $region5: #{tpu_custom_call.1} parent=1 // loop_body
      %s16 = ssub.s32 %s11, 1
      %s17 = ssub.s32 %s11, 2
      %s18 = sadd.s32 %s11, 1
      %s19 = ssub.s32 %s11, %s18
      %p20 = scmp.eq.s32.totalorder %s19, 0
      %s22 = sadd.s32 %s21, 1
      %s23 = scalar_select %p20, %s21, %s22
      %p26 = pneg %p20
      %p27 = scmp.eq.s32.totalorder %s11, 3
      %p28 = por %p26, %p27
      %p29 = scmp.ne.s32.totalorder %s21, %s24
      %p30 = scmp.eq.s32.totalorder %s11, 0
      %p31 = por %p29, %p30
      %p32 = scmp.ne.s32.totalorder %s21, %s24
      %p33 = scmp.eq.s32.totalorder %s16, 3
      %p34 = por %p32, %p33
      %p35 = scmp.ne.s32.totalorder %s24, %s25
      %p36 = scmp.eq.s32.totalorder %s16, 0
      %p37 = por %p35, %p36
      %p38 = scmp.ne.s32.totalorder %s24, %s25
      %p39 = scmp.eq.s32.totalorder %s17, 3
      %p40 = por %p38, %p39
      %p42 = scmp.ne.s32.totalorder %s25, %s41
      %p43 = scmp.eq.s32.totalorder %s17, 0
      %p44 = por %p42, %p43
      %s46 = sadd.s32 %s45, 1
      %p49 = scmp.eq.s32.totalorder %s11, 3
      %p50 = scmp.ne.s32.totalorder %s45, %s47
      %p51 = scmp.eq.s32.totalorder %s11, 0
      %p52 = por %p50, %p51
      %p53 = scmp.ne.s32.totalorder %s45, %s47
      %p54 = scmp.eq.s32.totalorder %s16, 3
      %p55 = por %p53, %p54
      %p56 = scmp.ne.s32.totalorder %s47, %s48
      %p57 = scmp.eq.s32.totalorder %s16, 0
      %p58 = por %p56, %p57
      %p59 = scmp.ne.s32.totalorder %s47, %s48
      %p60 = scmp.eq.s32.totalorder %s17, 3
      %p61 = por %p59, %p60
      %p63 = scmp.ne.s32.totalorder %s48, %s62
      %p64 = scmp.eq.s32.totalorder %s17, 0
      %p65 = por %p63, %p64
      %s66 = ssub.s32 %s11, %s18
      %p67 = scmp.eq.s32.totalorder %s66, 0
      %s69 = sadd.s32 %s68, 1
      %s70 = scalar_select %p67, %s68, %s69
      %p73 = pneg %p67
      %p74 = scmp.eq.s32.totalorder %s11, 3
      %p75 = por %p73, %p74
      %p76 = scmp.ne.s32.totalorder %s68, %s71
      %p77 = scmp.eq.s32.totalorder %s11, 0
      %p78 = por %p76, %p77
      %p79 = scmp.ne.s32.totalorder %s68, %s71
      %p80 = scmp.eq.s32.totalorder %s16, 3
      %p81 = por %p79, %p80
      %p82 = scmp.ne.s32.totalorder %s71, %s72
      %p83 = scmp.eq.s32.totalorder %s16, 0
      %p84 = por %p82, %p83
      %p85 = scmp.ne.s32.totalorder %s71, %s72
      %p86 = scmp.eq.s32.totalorder %s17, 3
      %p87 = por %p85, %p86
      %p89 = scmp.ne.s32.totalorder %s72, %s88
      %p90 = scmp.eq.s32.totalorder %s17, 0
      %p91 = por %p89, %p90
      %p92 = scmp.le.s32.totalorder 1, %s11
      %p93 = scmp.lt.s32.totalorder %s11, 5
      %p94 = pnand %p92, %p93
      %p95 = pneg %p94
      // Predicated region
      $region9: #{tpu_custom_call.1} parent=5 // pred_check
        _
      $region10: #{tpu_custom_call.1} parent=5 // pred_check_branch
        %97 = sbr.rel (%p94) target = $region12
      $region11: #{tpu_custom_call.1} parent=5 // pred_region
        %s98 = ssub.s32 %s11, 1
        // Predicated region
        $region13: #{tpu_custom_call.1} parent=11 // pred_check
          %p99 = pneg %p58
        $region14: #{tpu_custom_call.1} parent=11 // pred_check_branch
          %101 = sbr.rel (%p99) target = $region16
        $region15: #{tpu_custom_call.1} parent=11 // pred_region
          _
        $region16: #{tpu_custom_call.1} parent=11 // pred_fallthru
          _
      $region12: #{tpu_custom_call.1} parent=5 // pred_fallthru
        _
      %p102 = scmp.lt.s32.totalorder %s11, 4
      // Predicated region
      $region17: #{tpu_custom_call.1} parent=5 // pred_check
        %p103 = pneg %p102
      $region18: #{tpu_custom_call.1} parent=5 // pred_check_branch
        %105 = sbr.rel (%p103) target = $region20
      $region19: #{tpu_custom_call.1} parent=5 // pred_region
        // Predicated region
        $region21: #{tpu_custom_call.1} parent=19 // pred_check
          %p106 = pneg %p31
        $region22: #{tpu_custom_call.1} parent=19 // pred_check_branch
          %108 = sbr.rel (%p106) target = $region24
        $region23: #{tpu_custom_call.1} parent=19 // pred_region
          %s109 = smul.u32 16, %s11
          %p110 = scmp.lt.s32.totalorder %s109, 63
          %s111 = scalar_select %p110, %s109, 63
          %s112 = smul.addr %s111, 8
          %s113 = scalar_lea.vmem %s0, %s112
          %s114 = smul.u32 16, %s11
        $region24: #{tpu_custom_call.1} parent=19 // pred_fallthru
          _
      $region20: #{tpu_custom_call.1} parent=5 // pred_fallthru
        _
      %p115 = scmp.le.s32.totalorder 1, %s11
      %p116 = scmp.lt.s32.totalorder %s11, 5
      %p117 = pnand %p115, %p116
      %p118 = pneg %p117
      // Predicated region
      $region25: #{tpu_custom_call.1} parent=5 // pred_check
        _
      $region26: #{tpu_custom_call.1} parent=5 // pred_check_branch
        %120 = sbr.rel (%p117) target = $region28
      $region27: #{tpu_custom_call.1} parent=5 // pred_region
        %s121 = ssub.s32 %s11, 1
        %s122 = smul.u32 16, %s16
        %p123 = scmp.lt.s32.totalorder %s122, 63
        %s124 = scalar_select %p123, %s122, 63
        %s125 = smul.addr %s124, 8
        %s126 = scalar_lea.vmem %s0, %s125
        %p127 = pneg %p37
        %p128 = pneg %p34
        %p129 = pneg %p58
        %p130 = pneg %p55
        %p131 = pneg %p84
        %p132 = pneg %p81
        %s133 = sand.u32 %s71, 1
        %s134 = scalar_lea.sflag [#allocation3], %s133
        %s135 = sand.u32 %s71, 1
        %s136 = smul.addr %s135, 2
        %s137 = scalar_lea.vmem [#allocation2], %s136
        %s138 = smul.u32 16, %s16
        %p139 = scmp.lt.s32.totalorder %s138, 63
        %s140 = scalar_select %p139, %s138, 63
        %s141 = smul.addr %s140, 8
        %s142 = scalar_lea.vmem %s0, %s141
        %s143 = smul.u32 16, %s16
        %v144 = vld [vmem:[%s142] sm:$0xff]
        %v145 = vld [vmem:[%s142 + $0x8] sm:$0xff]
        %v146 = vld [vmem:[%s142 + $0x10] sm:$0xff]
        %v147 = vld [vmem:[%s142 + $0x18] sm:$0xff]
        %v148 = vld [vmem:[%s142 + $0x20] sm:$0xff]
        %v149 = vld [vmem:[%s142 + $0x28] sm:$0xff]
        %v150 = vld [vmem:[%s142 + $0x30] sm:$0xff]
        %v151 = vld [vmem:[%s142 + $0x38] sm:$0xff]
        %v152 = vld [vmem:[%s142 + $0x40] sm:$0xff]
        %v153 = vld [vmem:[%s142 + $0x48] sm:$0xff]
        %v154 = vld [vmem:[%s142 + $0x50] sm:$0xff]
        %v155 = vld [vmem:[%s142 + $0x58] sm:$0xff]
        %v156 = vld [vmem:[%s142 + $0x60] sm:$0xff]
        %v157 = vld [vmem:[%s142 + $0x68] sm:$0xff]
        %v158 = vld [vmem:[%s142 + $0x70] sm:$0xff]
        %v159 = vld [vmem:[%s142 + $0x78] sm:$0xff]
        %v160 = vld [vmem:[%s1] sm:$0xff]
        %v161 = vld [vmem:[%s1 + $0x8] sm:$0xff]
        %v162 = vld [vmem:[%s1 + $0x10] sm:$0xff]
        %v163 = vld [vmem:[%s1 + $0x18] sm:$0xff]
        %v164 = vld [vmem:[%s1 + $0x20] sm:$0xf]
        %vm165 = vcmask 293888
        %v167 = vsel %vm165, %v144, 0
        %v170 = vsel %vm165, %v145, 0
        %v173 = vsel %vm165, %v146, 0
        %v176 = vsel %vm165, %v147, 0
        %v179 = vsel %vm165, %v148, 0
        %v182 = vsel %vm165, %v149, 0
        %v185 = vsel %vm165, %v150, 0
        %v188 = vsel %vm165, %v151, 0
        %v191 = vsel %vm165, %v152, 0
        %v194 = vsel %vm165, %v153, 0
        %v197 = vsel %vm165, %v154, 0
        %v200 = vsel %vm165, %v155, 0
        %v203 = vsel %vm165, %v156, 0
        %v206 = vsel %vm165, %v157, 0
        %v209 = vsel %vm165, %v158, 0
        %v212 = vsel %vm165, %v159, 0
        %vm214 = vcmask 1043456
        %v216 = vsel %vm214, %v164, 0
        %218 = vmatprep.subr.mxu0 0.0
        %219 = vmatpush1.msra.mxu0 %v160
        %220 = vmatprep.subr.mxu0 0.0
        %221 = vmatpush1.msra.mxu0 %v161
        %222 = vmatprep.subr.mxu0 0.0
        %223 = vmatpush1.msra.mxu0 %v162
        %224 = vmatprep.subr.mxu0 0.0
        %225 = vmatpush1.msra.mxu0 %v163
        %226 = vmatprep.subr.mxu0 0.0
        %227 = vmatpush1.msra.mxu0 %v216
        %228 = vmatprep.subr.mxu0 0.0
        %229 = vmatpush1.msra.mxu0 0.0
        %230 = vmatprep.subr.mxu0 0.0
        %231 = vmatpush1.msra.mxu0 0.0
        %232 = vmatprep.subr.mxu0 0.0
        %233 = vmatpush1.msra.mxu0 0.0
        %234 = vmatprep.subr.mxu0 0.0
        %235 = vmatpush1.msra.mxu0 0.0
        %236 = vmatprep.subr.mxu0 0.0
        %237 = vmatpush1.msra.mxu0 0.0
        %238 = vmatprep.subr.mxu0 0.0
        %239 = vmatpush1.msra.mxu0 0.0
        %240 = vmatprep.subr.mxu0 0.0
        %241 = vmatpush1.msra.mxu0 0.0
        %242 = vmatprep.subr.mxu0 0.0
        %243 = vmatpush1.msra.mxu0 0.0
        %244 = vmatprep.subr.mxu0 0.0
        %245 = vmatpush1.msra.mxu0 0.0
        %246 = vmatprep.subr.mxu0 0.0
        %247 = vmatpush1.msra.mxu0 0.0
        %248 = vmatprep.subr.mxu0 0.0
        %249 = vmatpush1.msra.mxu0 0.0
        %250 = vmatprep.subr.mxu0 0.0
        %251 = vmatpush1.msra.mxu0 0.0
        %252 = vmatprep.subr.mxu0 0.0
        %253 = vmatpush1.msra.mxu0 0.0
        %254 = vmatprep.subr.mxu0 0.0
        %255 = vmatpush1.msra.mxu0 0.0
        %256 = vmatprep.subr.mxu0 0.0
        %257 = vmatpush1.msra.mxu0 0.0
        %258 = vmatprep.subr.mxu0 0.0
        %259 = vmatpush1.msra.mxu0 0.0
        %260 = vmatprep.subr.mxu0 0.0
        %261 = vmatpush1.msra.mxu0 0.0
        %262 = vmatprep.subr.mxu0 0.0
        %263 = vmatpush1.msra.mxu0 0.0
        %264 = vmatprep.subr.mxu0 0.0
        %265 = vmatpush1.msra.mxu0 0.0
        %266 = vmatprep.subr.mxu0 0.0
        %267 = vmatpush1.msra.mxu0 0.0
        %268 = vmatprep.subr.mxu0 0.0
        %269 = vmatpush1.msra.mxu0 0.0
        %270 = vmatprep.subr.mxu0 0.0
        %271 = vmatpush1.msra.mxu0 0.0
        %272 = vmatprep.subr.mxu0 0.0
        %273 = vmatpush1.msra.mxu0 0.0
        %274 = vmatprep.subr.mxu0 0.0
        %275 = vmatpush1.msra.mxu0 0.0
        %276 = vmatprep.subr.mxu0 0.0
        %277 = vmatpush1.msra.mxu0 0.0
        %278 = vmatprep.subr.mxu0 0.0
        %279 = vmatpush1.msra.mxu0 0.0
        %280 = vmatprep.subr.mxu0 0.0
        %281 = vmatpush1.msra.mxu0 0.0
        %282 = vmatprep.mubr.f32.mxu0 0.0
        %283 = vmatmul.mubr.f32.gmra.mrb[0].mxu0 %v167
        %v284 = vpop.f32.mrb[0].mxu0
        %v285 = vadd.f32 0.0, %v284
        %v286 = vpop.f32.mrb[0].mxu0
        %287 = vmatprep.mubr.f32.mxu0 0.0
        %288 = vmatmul.mubr.f32.gmra.mrb[0].mxu0 %v170
        %v289 = vpop.f32.mrb[0].mxu0
        %v290 = vadd.f32 0.0, %v289
        %v291 = vpop.f32.mrb[0].mxu0
        %292 = vmatprep.mubr.f32.mxu0 0.0
        %293 = vmatmul.mubr.f32.gmra.mrb[0].mxu0 %v173
        %v294 = vpop.f32.mrb[0].mxu0
        %v295 = vadd.f32 0.0, %v294
        %v296 = vpop.f32.mrb[0].mxu0
        %297 = vmatprep.mubr.f32.mxu0 0.0
        %298 = vmatmul.mubr.f32.gmra.mrb[0].mxu0 %v176
        %v299 = vpop.f32.mrb[0].mxu0
        %v300 = vadd.f32 0.0, %v299
        %v301 = vpop.f32.mrb[0].mxu0
        %302 = vmatprep.mubr.f32.mxu0 0.0
        %303 = vmatmul.mubr.f32.gmra.mrb[0].mxu0 %v179
        %v304 = vpop.f32.mrb[0].mxu0
        %v305 = vadd.f32 0.0, %v304
        %v306 = vpop.f32.mrb[0].mxu0
        %307 = vmatprep.mubr.f32.mxu0 0.0
        %308 = vmatmul.mubr.f32.gmra.mrb[0].mxu0 %v182
        %v309 = vpop.f32.mrb[0].mxu0
        %v310 = vadd.f32 0.0, %v309
        %v311 = vpop.f32.mrb[0].mxu0
        %312 = vmatprep.mubr.f32.mxu0 0.0
        %313 = vmatmul.mubr.f32.gmra.mrb[0].mxu0 %v185
        %v314 = vpop.f32.mrb[0].mxu0
        %v315 = vadd.f32 0.0, %v314
        %v316 = vpop.f32.mrb[0].mxu0
        %317 = vmatprep.mubr.f32.mxu0 0.0
        %318 = vmatmul.mubr.f32.gmra.mrb[0].mxu0 %v188
        %v319 = vpop.f32.mrb[0].mxu0
        %v320 = vadd.f32 0.0, %v319
        %v321 = vpop.f32.mrb[0].mxu0
        %322 = vmatprep.mubr.f32.mxu0 0.0
        %323 = vmatmul.mubr.f32.gmra.mrb[0].mxu0 %v191
        %v324 = vpop.f32.mrb[0].mxu0
        %v325 = vadd.f32 0.0, %v324
        %v326 = vpop.f32.mrb[0].mxu0
        %327 = vmatprep.mubr.f32.mxu0 0.0
        %328 = vmatmul.mubr.f32.gmra.mrb[0].mxu0 %v194
        %v329 = vpop.f32.mrb[0].mxu0
        %v330 = vadd.f32 0.0, %v329
        %v331 = vpop.f32.mrb[0].mxu0
        %332 = vmatprep.mubr.f32.mxu0 0.0
        %333 = vmatmul.mubr.f32.gmra.mrb[0].mxu0 %v197
        %v334 = vpop.f32.mrb[0].mxu0
        %v335 = vadd.f32 0.0, %v334
        %v336 = vpop.f32.mrb[0].mxu0
        %337 = vmatprep.mubr.f32.mxu0 0.0
        %338 = vmatmul.mubr.f32.gmra.mrb[0].mxu0 %v200
        %v339 = vpop.f32.mrb[0].mxu0
        %v340 = vadd.f32 0.0, %v339
        %v341 = vpop.f32.mrb[0].mxu0
        %342 = vmatprep.mubr.f32.mxu0 0.0
        %343 = vmatmul.mubr.f32.gmra.mrb[0].mxu0 %v203
        %v344 = vpop.f32.mrb[0].mxu0
        %v345 = vadd.f32 0.0, %v344
        %v346 = vpop.f32.mrb[0].mxu0
        %347 = vmatprep.mubr.f32.mxu0 0.0
        %348 = vmatmul.mubr.f32.gmra.mrb[0].mxu0 %v206
        %v349 = vpop.f32.mrb[0].mxu0
        %v350 = vadd.f32 0.0, %v349
        %v351 = vpop.f32.mrb[0].mxu0
        %352 = vmatprep.mubr.f32.mxu0 0.0
        %353 = vmatmul.mubr.f32.gmra.mrb[0].mxu0 %v209
        %v354 = vpop.f32.mrb[0].mxu0
        %v355 = vadd.f32 0.0, %v354
        %v356 = vpop.f32.mrb[0].mxu0
        %357 = vmatprep.mubr.f32.mxu0 0.0
        %358 = vmatmul.mubr.f32.gmra.mrb[0].mxu0 %v212
        %v359 = vpop.f32.mrb[0].mxu0
        %v360 = vadd.f32 0.0, %v359
        %v361 = vpop.f32.mrb[0].mxu0
        %362 = vdwg.mxu0
        %v363 = vadd.f32 %v285, %v290
        %v364 = vadd.f32 %v363, %v295
        %v365 = vadd.f32 %v364, %v300
        %v366 = vadd.f32 %v365, %v305
        %v367 = vadd.f32 %v366, %v310
        %v368 = vadd.f32 %v367, %v315
        %v369 = vadd.f32 %v368, %v320
        %v370 = vadd.f32 %v369, %v325
        %v371 = vadd.f32 %v370, %v330
        %v372 = vadd.f32 %v371, %v335
        %v373 = vadd.f32 %v372, %v340
        %v374 = vadd.f32 %v373, %v345
        %v375 = vadd.f32 %v374, %v350
        %v376 = vadd.f32 %v375, %v355
        %v377 = vadd.f32 %v376, %v360
        %v378 = vrot.slane %v377, 4
        %v379 = vadd.f32 %v377, %v378
        %v380 = vrot.slane %v379, 2
        %v381 = vadd.f32 %v379, %v380
        %v382 = vrot.slane %v381, 1
        %v383 = vadd.f32 %v381, %v382
        %v384 = vmul.f32 %v285, %v285
        %v385 = vmul.f32 %v290, %v290
        %v386 = vmul.f32 %v295, %v295
        %v387 = vmul.f32 %v300, %v300
        %v388 = vmul.f32 %v305, %v305
        %v389 = vmul.f32 %v310, %v310
        %v390 = vmul.f32 %v315, %v315
        %v391 = vmul.f32 %v320, %v320
        %v392 = vmul.f32 %v325, %v325
        %v393 = vmul.f32 %v330, %v330
        %v394 = vmul.f32 %v335, %v335
        %v395 = vmul.f32 %v340, %v340
        %v396 = vmul.f32 %v345, %v345
        %v397 = vmul.f32 %v350, %v350
        %v398 = vmul.f32 %v355, %v355
        %v399 = vmul.f32 %v360, %v360
        %v400 = vadd.f32 %v384, %v385
        %v401 = vadd.f32 %v400, %v386
        %v402 = vadd.f32 %v401, %v387
        %v403 = vadd.f32 %v402, %v388
        %v404 = vadd.f32 %v403, %v389
        %v405 = vadd.f32 %v404, %v390
        %v406 = vadd.f32 %v405, %v391
        %v407 = vadd.f32 %v406, %v392
        %v408 = vadd.f32 %v407, %v393
        %v409 = vadd.f32 %v408, %v394
        %v410 = vadd.f32 %v409, %v395
        %v411 = vadd.f32 %v410, %v396
        %v412 = vadd.f32 %v411, %v397
        %v413 = vadd.f32 %v412, %v398
        %v414 = vadd.f32 %v413, %v399
        %v415 = vrot.slane %v414, 4
        %v416 = vadd.f32 %v414, %v415
        %v417 = vrot.slane %v416, 2
        %v418 = vadd.f32 %v416, %v417
        %v419 = vrot.slane %v418, 1
        %v420 = vadd.f32 %v418, %v419
        %vm421 = vcmask 1040384
        %v422 = vsel %vm421, %v383, %v420
        %423 = vst [vmem:[%s137] sm:$0x3] %v422
        %s424 = sand.u32 %s71, 1
        %s425 = scalar_lea.sflag [#allocation3], %s424
        %s426 = sand.u32 %s71, 1
        %s427 = smul.addr %s426, 2
        %s428 = scalar_lea.vmem [#allocation2], %s427
        // Predicated region
        $region29: #{tpu_custom_call.1} parent=27 // pred_check
          %p429 = pneg %p81
        $region30: #{tpu_custom_call.1} parent=27 // pred_check_branch
          %431 = sbr.rel (%p429) target = $region32
        $region31: #{tpu_custom_call.1} parent=27 // pred_region
          %s433 = ssub.s32 32, 32
          %434 = vsyncadd %s425, %s433
          %s435 = smul.addr %s16, 32
          %s436 = scalar_lea.hbm %s2, %s435
          %s438 = sshll.u32 %s428, 4
          %s439 = int_to_ptr.vmem [resolvable:$true] %s438
          %441 = dma.vmem_to_hbm [thread:$0]  %s439, 32, %s436, %s425
        $region32: #{tpu_custom_call.1} parent=27 // pred_fallthru
          _
      $region28: #{tpu_custom_call.1} parent=5 // pred_fallthru
        _
      %p442 = scmp.le.s32.totalorder 2, %s11
      // Predicated region
      $region33: #{tpu_custom_call.1} parent=5 // pred_check
        %p443 = pneg %p442
      $region34: #{tpu_custom_call.1} parent=5 // pred_check_branch
        %445 = sbr.rel (%p443) target = $region36
      $region35: #{tpu_custom_call.1} parent=5 // pred_region
        %s446 = ssub.s32 %s11, 2
        // Predicated region
        $region37: #{tpu_custom_call.1} parent=35 // pred_check
          %p447 = pneg %p87
        $region38: #{tpu_custom_call.1} parent=35 // pred_check_branch
          %449 = sbr.rel (%p447) target = $region40
        $region39: #{tpu_custom_call.1} parent=35 // pred_region
          %s450 = sand.u32 %s72, 1
          %s451 = scalar_lea.sflag [#allocation3], %s450
          %s452 = sand.u32 %s72, 1
          %s453 = smul.addr %s452, 2
          %s454 = scalar_lea.vmem [#allocation2], %s453
          %455 = dma.done %s451, 32
        $region40: #{tpu_custom_call.1} parent=35 // pred_fallthru
          _
      $region36: #{tpu_custom_call.1} parent=5 // pred_fallthru
        _
    $region6: #{tpu_custom_call.1} parent=1 // loop_footer
      %s15 = sadd.s32 1, %s11
    $region7: #{tpu_custom_call.1} parent=1 // loop_footer_branch
      %10 = sbr.rel target = $region3
    $region8: #{tpu_custom_call.1} parent=1 // loop_exit
      _
    %456 = vsyncpa [#allocation3], 1
    %s457 = scalar_lea.sflag [#allocation3], 1
    %458 = vsyncpa %s457, 1

</llo_original>
